<compile_context>
chip_gen: v6e
topology: v6e:2x2x1
jax: 0.10.0
libtpu: 0.0.40
codegen_flags: <defaults>
</compile_context>

<pallas_src>
import functools

import jax
import jax.numpy as jnp
from jax import lax
from jax.experimental import pallas as pl
from jax.experimental.pallas import tpu as pltpu


def _rowsum8(x, rows, lanes):
    """Sum an (rows, lanes) f32 block down to (8, lanes) with plain VPU adds."""
    acc = x[0:8, :]
    for rr in range(1, rows // 8):
        acc = acc + x[rr * 8:(rr + 1) * 8, :]
    return acc


def _focal_kernel(out_ref, tgt_ref, loss_ref, lpart_ref, spart_ref, *,
                  num_classes, hw, ignore_index, ignore_background,
                  train_id_0, focus):
    j = pl.program_id(1)
    C = num_classes

    logits = out_ref[...].astype(jnp.float32)          # (C, R, L)
    t = tgt_ref[...].astype(jnp.int32)                 # (R, L)
    R, L = t.shape

    # ---- target preprocessing (torch.add / background remap) ----
    t = t - train_id_0
    bg = 255 - train_id_0
    bg_val = ignore_index if ignore_background else (C - 1)
    t = jnp.where(t == bg, bg_val, t)

    # ---- log-sum-exp over the class (leading/plane) axis: VPU + EUP only ----
    m = jnp.max(logits, axis=0)                        # (R, L)
    s = jnp.sum(jnp.exp(logits - m[None]), axis=0)     # (R, L)
    log_s = jnp.log(s)

    # ---- gather the target-class logit via one-hot select over planes ----
    cls = lax.broadcasted_iota(jnp.int32, logits.shape, 0)   # (C, R, L)
    onehot = cls == t[None]
    logit_t = jnp.sum(jnp.where(onehot, logits, 0.0), axis=0)  # (R, L)

    log_p_t = logit_t - m - log_s
    p_t = jnp.exp(log_p_t)

    # ---- validity masks (class range, ignore_index, spatial padding) ----
    row = lax.broadcasted_iota(jnp.int32, (R, L), 0)
    lane = lax.broadcasted_iota(jnp.int32, (R, L), 1)
    pix = (j * R + row) * L + lane
    in_range = (t >= 0) & (t < C) & (pix < hw)
    not_ignored = t != ignore_index

    scale_pix = jnp.where(in_range, lax.integer_pow(1.0 - p_t, focus), 0.0)
    nll_pix = jnp.where(in_range & not_ignored, -log_p_t, 0.0)
    loss_pix = scale_pix * nll_pix                     # (R, L)

    loss_ref[...] = loss_pix.astype(loss_ref.dtype)
    lpart_ref[...] = _rowsum8(loss_pix, R, L)
    spart_ref[...] = _rowsum8(scale_pix, R, L)


def focal_loss(outputs, targets, *, ignore_index=-100, ignore_background=False,
               train_id_0=0, reduction='mean', focus=0, pixels_per_tile=8192):
    assert reduction in ('mean', 'sum', 'none')
    N, C = outputs.shape[0], outputs.shape[1]
    spatial = outputs.shape[2:]
    assert targets.shape == (N,) + spatial

    HW = 1
    for d in spatial:
        HW *= d

    L = 128
    itemsize = jnp.dtype(outputs.dtype).itemsize
    # Cap the logits block at ~4 MiB so double-buffered inputs + outputs fit
    # comfortably in scoped VMEM on v5e (16 MiB) / v6e / v7x (32 MiB).
    r_cap = max(8, ((4 * 1024 * 1024) // (C * L * itemsize)) // 8 * 8)
    r_target = max(8, (pixels_per_tile // L) // 8 * 8)
    rtot_min = -(-HW // L)              # cdiv(HW, 128)
    rtot_min = -(-rtot_min // 8) * 8    # round up to a multiple of 8
    R = min(r_target, r_cap, rtot_min)
    Rtot = -(-rtot_min // R) * R        # multiple of R (and of 8)
    HWp = Rtot * L
    num_j = Rtot // R

    # NCHW consumed directly: only reshape + (cheap) pad of the pixel axis.
    x = outputs.reshape(N, C, HW)
    t = targets.reshape(N, HW).astype(jnp.int32)
    if HWp != HW:
        x = jnp.pad(x, ((0, 0), (0, 0), (0, HWp - HW)))
        t = jnp.pad(t, ((0, 0), (0, HWp - HW)))
    x = x.reshape(N, C, Rtot, L)
    t = t.reshape(N, Rtot, L)

    kernel = functools.partial(
        _focal_kernel, num_classes=C, hw=HW, ignore_index=ignore_index,
        ignore_background=ignore_background, train_id_0=train_id_0,
        focus=focus)

    loss_full, lpart, spart = pl.pallas_call(
        kernel,
        out_shape=(jax.ShapeDtypeStruct((N, Rtot, L), jnp.float32),
                   jax.ShapeDtypeStruct((N, num_j, 8, L), jnp.float32),
                   jax.ShapeDtypeStruct((N, num_j, 8, L), jnp.float32)),
        grid_spec=pltpu.PrefetchScalarGridSpec(
            num_scalar_prefetch=0,
            grid=(N, num_j),
            in_specs=[
                pl.BlockSpec((None, C, R, L), lambda n, j: (n, 0, j, 0)),
                pl.BlockSpec((None, R, L), lambda n, j: (n, j, 0)),
            ],
            out_specs=(
                pl.BlockSpec((None, R, L), lambda n, j: (n, j, 0)),
                pl.BlockSpec((None, None, 8, L), lambda n, j: (n, j, 0, 0)),
                pl.BlockSpec((None, None, 8, L), lambda n, j: (n, j, 0, 0)),
            )),
        compiler_params=pltpu.CompilerParams(
            dimension_semantics=("parallel", "parallel"),
            vmem_limit_bytes=32 * 1024 * 1024),
    )(x, t)

    if reduction == 'mean':
        return jnp.sum(lpart) / jnp.sum(spart)
    elif reduction == 'sum':
        return jnp.sum(lpart)
    else:
        return loss_full.reshape(N, HWp)[:, :HW].reshape((N,) + spatial)


def focal_loss_ref(outputs, targets, *, ignore_index=-100,
                   ignore_background=False, train_id_0=0, reduction='mean',
                   focus=0):
    """Pure-JAX reference mirroring the PyTorch forward."""
    C = outputs.shape[1]
    t = targets - train_id_0
    bg = 255 - train_id_0
    t = jnp.where(t == bg, ignore_index if ignore_background else C - 1, t)
    sm = jax.nn.softmax(outputs, axis=1)
    log_sm = jax.nn.log_softmax(outputs, axis=1)
    scale_full = (1.0 - sm) ** focus
    cls_shape = (1, C) + (1,) * (t.ndim - 1)
    onehot = t[:, None, ...] == jnp.arange(C).reshape(cls_shape)
    scale = jnp.sum(jnp.where(onehot, scale_full, 0.0), axis=1)
    nll = -jnp.sum(jnp.where(onehot, log_sm, 0.0), axis=1)
    nll = jnp.where(t == ignore_index, 0.0, nll)   # NLLLoss ignore_index
    loss = scale * nll
    if reduction == 'mean':
        return jnp.sum(loss) / jnp.sum(scale)
    elif reduction == 'sum':
        return jnp.sum(loss)
    return loss


if __name__ == "__main__":
    key = jax.random.PRNGKey(0)
    k1, k2, k3, k4 = jax.random.split(key, 4)

    # Test 1: module-default-ish small case (N=2, C=4, 16x16), bg + ignore px.
    N, C, H, W = 2, 4, 16, 16
    outputs = jax.random.normal(k1, (N, C, H, W), dtype=jnp.float32)
    targets = jax.random.randint(k2, (N, H, W), 0, C).astype(jnp.int32)
    targets = targets.at[0, 0, 0].set(255)    # background pixel
    targets = targets.at[1, 0, 0].set(-100)   # ignored pixel

    for focus in (0, 2):
        for red in ('mean', 'sum', 'none'):
            got = jax.block_until_ready(
                focal_loss(outputs, targets, focus=focus, reduction=red))
            want = focal_loss_ref(outputs, targets, focus=focus, reduction=red)
            assert jnp.allclose(got, want, rtol=2e-5, atol=1e-5), \
                (focus, red, got, want)

    # Test 2: non-128-aligned spatial dims (exercises in-kernel pad mask and
    # multiple pixel blocks per sample), typical C=19, ignore_background=True.
    N2, C2, H2, W2 = 2, 19, 33, 47
    out2 = jax.random.normal(k3, (N2, C2, H2, W2), dtype=jnp.float32)
    tgt2 = jax.random.randint(k4, (N2, H2, W2), 0, C2).astype(jnp.int32)
    tgt2 = tgt2.at[0, 5, 7].set(255)
    tgt2 = tgt2.at[1, 2, 3].set(-100)
    got2 = jax.block_until_ready(
        focal_loss(out2, tgt2, focus=3, reduction='mean',
                   ignore_background=True, pixels_per_tile=1024))
    want2 = focal_loss_ref(out2, tgt2, focus=3, reduction='mean',
                           ignore_background=True)
    assert jnp.allclose(got2, want2, rtol=2e-5, atol=1e-5), (got2, want2)

    print("KERNEL_OK")
</pallas_src>

<mosaic_0001>
module attributes {stable_mosaic.version = 11 : i64} {
  func.func @_focal_kernel(%arg0: i32, %arg1: i32, %arg2: memref<1x4x8x128xf32, #tpu.memory_space<vmem>>, %arg3: memref<1x8x128xi32, #tpu.memory_space<vmem>>, %arg4: memref<1x8x128xf32, #tpu.memory_space<vmem>>, %arg5: memref<1x1x8x128xf32, #tpu.memory_space<vmem>>, %arg6: memref<1x1x8x128xf32, #tpu.memory_space<vmem>>) attributes {dimension_semantics = [#tpu.dimension_semantics<parallel>, #tpu.dimension_semantics<parallel>], iteration_bounds = array<i64: 2, 1>, scalar_prefetch = 0 : i64, scratch_operands = 0 : i64, tpu.core_type = #tpu.core_type<tc>, window_params = [{transform_indices = @transform_0, window_bounds = array<i64: 1, 4, 8, 128>}, {transform_indices = @transform_1, window_bounds = array<i64: 1, 8, 128>}, {transform_indices = @transform_2, window_bounds = array<i64: 1, 8, 128>}, {transform_indices = @transform_3, window_bounds = array<i64: 1, 1, 8, 128>}, {transform_indices = @transform_4, window_bounds = array<i64: 1, 1, 8, 128>}]} {
    %c0 = arith.constant 0 : index
    %c0_0 = arith.constant 0 : index
    %c0_1 = arith.constant 0 : index
    %c0_2 = arith.constant 0 : index
    %0 = vector.load %arg2[%c0, %c0_0, %c0_1, %c0_2] : memref<1x4x8x128xf32, #tpu.memory_space<vmem>>, vector<1x4x8x128xf32>
    %1 = vector.shape_cast %0 : vector<1x4x8x128xf32> to vector<4x8x128xf32>
    %c0_3 = arith.constant 0 : index
    %c0_4 = arith.constant 0 : index
    %c0_5 = arith.constant 0 : index
    %2 = vector.load %arg3[%c0_3, %c0_4, %c0_5] : memref<1x8x128xi32, #tpu.memory_space<vmem>>, vector<1x8x128xi32>
    %3 = vector.shape_cast %2 : vector<1x8x128xi32> to vector<8x128xi32>
    %c0_i32 = arith.constant 0 : i32
    %4 = vector.broadcast %c0_i32 : i32 to vector<8x128xi32>
    %5 = arith.subi %3, %4 : vector<8x128xi32>
    %c255_i32 = arith.constant 255 : i32
    %6 = vector.broadcast %c255_i32 : i32 to vector<8x128xi32>
    %7 = arith.cmpi eq, %5, %6 : vector<8x128xi32>
    %c3_i32 = arith.constant 3 : i32
    %8 = vector.broadcast %c3_i32 : i32 to vector<8x128xi32>
    %9 = arith.select %7, %8, %5 : vector<8x128xi1>, vector<8x128xi32>
    %cst = arith.constant dense<0xFF800000> : vector<8x128xf32>
    %10 = vector.multi_reduction <maximumf>, %1, %cst [0] : vector<4x8x128xf32> to vector<8x128xf32>
    %11 = vector.shape_cast %10 : vector<8x128xf32> to vector<1x8x128xf32>
    %12 = vector.broadcast %11 : vector<1x8x128xf32> to vector<4x8x128xf32>
    %13 = arith.subf %1, %12 : vector<4x8x128xf32>
    %14 = math.exp %13 : vector<4x8x128xf32>
    %cst_6 = arith.constant dense<0.000000e+00> : vector<8x128xf32>
    %15 = vector.multi_reduction <add>, %14, %cst_6 [0] : vector<4x8x128xf32> to vector<8x128xf32>
    %16 = math.log %15 : vector<8x128xf32>
    %17 = tpu.iota {dimensions = array<i32: 0>} : vector<4x8x128xi32>
    %18 = vector.shape_cast %9 : vector<8x128xi32> to vector<1x8x128xi32>
    %19 = vector.broadcast %18 : vector<1x8x128xi32> to vector<4x8x128xi32>
    %20 = arith.cmpi eq, %17, %19 : vector<4x8x128xi32>
    %cst_7 = arith.constant 0.000000e+00 : f32
    %21 = vector.broadcast %cst_7 : f32 to vector<4x8x128xf32>
    %22 = arith.select %20, %1, %21 : vector<4x8x128xi1>, vector<4x8x128xf32>
    %cst_8 = arith.constant dense<0.000000e+00> : vector<8x128xf32>
    %23 = vector.multi_reduction <add>, %22, %cst_8 [0] : vector<4x8x128xf32> to vector<8x128xf32>
    %24 = arith.subf %23, %10 : vector<8x128xf32>
    %25 = arith.subf %24, %16 : vector<8x128xf32>
    %26 = math.exp %25 : vector<8x128xf32>
    %27 = tpu.iota {dimensions = array<i32: 0>} : vector<8x128xi32>
    %28 = tpu.iota {dimensions = array<i32: 1>} : vector<8x128xi32>
    %c8_i32 = arith.constant 8 : i32
    %29 = arith.muli %arg1, %c8_i32 : i32
    %30 = vector.broadcast %29 : i32 to vector<8x128xi32>
    %31 = arith.addi %30, %27 : vector<8x128xi32>
    %c128_i32 = arith.constant 128 : i32
    %32 = vector.broadcast %c128_i32 : i32 to vector<8x128xi32>
    %33 = arith.muli %31, %32 : vector<8x128xi32>
    %34 = arith.addi %33, %28 : vector<8x128xi32>
    %c0_i32_9 = arith.constant 0 : i32
    %35 = vector.broadcast %c0_i32_9 : i32 to vector<8x128xi32>
    %36 = arith.cmpi sge, %9, %35 : vector<8x128xi32>
    %c4_i32 = arith.constant 4 : i32
    %37 = vector.broadcast %c4_i32 : i32 to vector<8x128xi32>
    %38 = arith.cmpi slt, %9, %37 : vector<8x128xi32>
    %39 = arith.andi %36, %38 : vector<8x128xi1>
    %c256_i32 = arith.constant 256 : i32
    %40 = vector.broadcast %c256_i32 : i32 to vector<8x128xi32>
    %41 = arith.cmpi slt, %34, %40 : vector<8x128xi32>
    %42 = arith.andi %39, %41 : vector<8x128xi1>
    %c-100_i32 = arith.constant -100 : i32
    %43 = vector.broadcast %c-100_i32 : i32 to vector<8x128xi32>
    %44 = arith.cmpi ne, %9, %43 : vector<8x128xi32>
    %cst_10 = arith.constant 1.000000e+00 : f32
    %45 = vector.broadcast %cst_10 : f32 to vector<8x128xf32>
    %46 = arith.subf %45, %26 : vector<8x128xf32>
    %cst_11 = arith.constant 1.000000e+00 : f32
    %47 = vector.broadcast %cst_11 : f32 to vector<8x128xf32>
    %cst_12 = arith.constant 0.000000e+00 : f32
    %48 = vector.broadcast %cst_12 : f32 to vector<8x128xf32>
    %49 = arith.select %42, %47, %48 : vector<8x128xi1>, vector<8x128xf32>
    %50 = arith.andi %42, %44 : vector<8x128xi1>
    %cst_13 = arith.constant 0.000000e+00 : f32
    %51 = vector.broadcast %cst_13 : f32 to vector<8x128xf32>
    %52 = arith.subf %51, %25 : vector<8x128xf32>
    %cst_14 = arith.constant 0.000000e+00 : f32
    %53 = vector.broadcast %cst_14 : f32 to vector<8x128xf32>
    %54 = arith.select %50, %52, %53 : vector<8x128xi1>, vector<8x128xf32>
    %55 = arith.mulf %49, %54 : vector<8x128xf32>
    %c0_15 = arith.constant 0 : index
    %c0_16 = arith.constant 0 : index
    %c0_17 = arith.constant 0 : index
    %56 = vector.load %arg4[%c0_15, %c0_16, %c0_17] : memref<1x8x128xf32, #tpu.memory_space<vmem>>, vector<1x8x128xf32>
    %57 = vector.shape_cast %56 : vector<1x8x128xf32> to vector<8x128xf32>
    %58 = vector.shape_cast %55 : vector<8x128xf32> to vector<1x8x128xf32>
    tpu.vector_store %arg4[%c0_15, %c0_16, %c0_17], %58 {strides = array<i32>} : memref<1x8x128xf32, #tpu.memory_space<vmem>>, vector<1x8x128xf32>,
    %c0_18 = arith.constant 0 : index
    %c0_19 = arith.constant 0 : index
    %c0_20 = arith.constant 0 : index
    %c0_21 = arith.constant 0 : index
    %59 = vector.load %arg5[%c0_18, %c0_19, %c0_20, %c0_21] : memref<1x1x8x128xf32, #tpu.memory_space<vmem>>, vector<1x1x8x128xf32>
    %60 = vector.shape_cast %59 : vector<1x1x8x128xf32> to vector<8x128xf32>
    %61 = vector.shape_cast %55 : vector<8x128xf32> to vector<1x1x8x128xf32>
    tpu.vector_store %arg5[%c0_18, %c0_19, %c0_20, %c0_21], %61 {strides = array<i32>} : memref<1x1x8x128xf32, #tpu.memory_space<vmem>>, vector<1x1x8x128xf32>,
    %c0_22 = arith.constant 0 : index
    %c0_23 = arith.constant 0 : index
    %c0_24 = arith.constant 0 : index
    %c0_25 = arith.constant 0 : index
    %62 = vector.load %arg6[%c0_22, %c0_23, %c0_24, %c0_25] : memref<1x1x8x128xf32, #tpu.memory_space<vmem>>, vector<1x1x8x128xf32>
    %63 = vector.shape_cast %62 : vector<1x1x8x128xf32> to vector<8x128xf32>
    %64 = vector.shape_cast %49 : vector<8x128xf32> to vector<1x1x8x128xf32>
    tpu.vector_store %arg6[%c0_22, %c0_23, %c0_24, %c0_25], %64 {strides = array<i32>} : memref<1x1x8x128xf32, #tpu.memory_space<vmem>>, vector<1x1x8x128xf32>,
    return
  }
  func.func @transform_0(%arg0: i32, %arg1: i32) -> (i32, i32, i32, i32) {
    %c0_i32 = arith.constant 0 : i32
    %c0_i32_0 = arith.constant 0 : i32
    %c0_i32_1 = arith.constant 0 : i32
    return %arg0, %c0_i32, %arg1, %c0_i32_0 : i32, i32, i32, i32
  }
  func.func @transform_1(%arg0: i32, %arg1: i32) -> (i32, i32, i32) {
    %c0_i32 = arith.constant 0 : i32
    %c0_i32_0 = arith.constant 0 : i32
    return %arg0, %arg1, %c0_i32 : i32, i32, i32
  }
  func.func @transform_2(%arg0: i32, %arg1: i32) -> (i32, i32, i32) {
    %c0_i32 = arith.constant 0 : i32
    %c0_i32_0 = arith.constant 0 : i32
    return %arg0, %arg1, %c0_i32 : i32, i32, i32
  }
  func.func @transform_3(%arg0: i32, %arg1: i32) -> (i32, i32, i32, i32) {
    %c0_i32 = arith.constant 0 : i32
    %c0_i32_0 = arith.constant 0 : i32
    %c0_i32_1 = arith.constant 0 : i32
    return %arg0, %arg1, %c0_i32, %c0_i32_0 : i32, i32, i32, i32
  }
  func.func @transform_4(%arg0: i32, %arg1: i32) -> (i32, i32, i32, i32) {
    %c0_i32 = arith.constant 0 : i32
    %c0_i32_0 = arith.constant 0 : i32
    %c0_i32_1 = arith.constant 0 : i32
    return %arg0, %arg1, %c0_i32, %c0_i32_0 : i32, i32, i32, i32
  }
}

</mosaic_0001>

<llo_original>
// kernel: tpu_custom_call.1
$region0: #{tpu_custom_call.1}
  #allocation0 [shape = 'u32[]', space=smem, size = 0x4, offset = 0x4, fixed_abs, tag = 'smem constant byte address 0x4 - core index']
  #allocation1 [shape = 'u32[144,128]{1,0:T(1,128)}', space=vmem, size = 0x12000, scoped, tag = 'internal scratch']
  %s0 = inlined_call_operand.hbm [shape: f32[2,4,8,128], index: 0, kind: input, shape index: {}]
  %s1 = inlined_call_operand.hbm [shape: s32[2,8,128], index: 1, kind: input, shape index: {}]
  %s2 = inlined_call_operand.hbm [shape: f32[2,8,128], index: 2, kind: output, shape index: {0}]
  %s3 = inlined_call_operand.hbm [shape: f32[2,1,8,128], index: 3, kind: output, shape index: {1}]
  %s4 = inlined_call_operand.hbm [shape: f32[2,1,8,128], index: 4, kind: output, shape index: {2}]
  %5 = xla_tuple %s2, %s3, %s4
  %s6 = sld [smem:[#allocation0]]
  $region65: #{tpu_custom_call.1} parent=0
    _
  %s8 = ssub.s32 1, %s6
  %s9 = scalar_select 0, %s8, %s6
  $region1: #{tpu_custom_call.1} parent=0
    #allocation2 [shape = 'u8[32768]{0}', space=vmem, size = 0x8000, scoped, tag = 'input window, operand 0']
    #allocation3 [shape = 's32[2]{0}', space=sflag, size = 0x8, scoped, tag = 'scoped memory for tpu_custom_call.1']
    #allocation4 [shape = 's32[2]{0}', space=sflag, size = 0x8, scoped, tag = 'scoped memory for tpu_custom_call.1']
    #allocation5 [shape = 'u8[8192]{0}', space=vmem, size = 0x2000, scoped, tag = 'input window, operand 1']
    #allocation6 [shape = 's32[2]{0}', space=sflag, size = 0x8, scoped, tag = 'scoped memory for tpu_custom_call.1']
    #allocation7 [shape = 'u8[8192]{0}', space=vmem, size = 0x2000, scoped, tag = 'output window, operand 0']
    #allocation8 [shape = 'u8[8192]{0}', space=vmem, size = 0x2000, scoped, tag = 'output window, operand 1']
    #allocation9 [shape = 's32[2]{0}', space=sflag, size = 0x8, scoped, tag = 'scoped memory for tpu_custom_call.1']
    #allocation10 [shape = 'u8[8192]{0}', space=vmem, size = 0x2000, scoped, tag = 'output window, operand 2']
    %10 = vsyncpa [#allocation3], 0
    %s11 = scalar_lea.sflag [#allocation3], 1
    %12 = vsyncpa %s11, 0
    %13 = vsyncpa [#allocation6], 0
    %s14 = scalar_lea.sflag [#allocation6], 1
    %15 = vsyncpa %s14, 0
    %16 = vsyncpa [#allocation4], 0
    %s17 = scalar_lea.sflag [#allocation4], 1
    %18 = vsyncpa %s17, 0
    %19 = vsyncpa [#allocation9], 0
    %s20 = scalar_lea.sflag [#allocation9], 1
    %21 = vsyncpa %s20, 0
    loop: start=0, step=1, limit=4
    $region2: #{tpu_custom_call.1} parent=1 // loop_pre_header
      _
    $region3: #{tpu_custom_call.1} parent=1 // loop_header
      %s23 = sphi 0, %s27
      %p24 = scmp.ge.s32.totalorder %s23, 4
      %s30 = sphi 0, %s42
      %s31 = sphi 0, %s38
      %s32 = sphi 0, %s30
      %s33 = sphi 0, %s31
      %s34 = sphi 0, %s32
      %s35 = sphi 0, %s33
      %s47 = sphi 0, %s49
      %s50 = sphi 0, %s47
      %s51 = sphi 0, %s50
      %s67 = sphi 0, %s51
      %s75 = sphi 0, %s77
      %s78 = sphi 0, %s75
      %s79 = sphi 0, %s78
      %s95 = sphi 0, %s79
      %s103 = sphi 0, %s105
      %s106 = sphi 0, %s103
      %s107 = sphi 0, %s106
      %s123 = sphi 0, %s107
      %s131 = sphi 0, %s133
      %s134 = sphi 0, %s131
      %s135 = sphi 0, %s134
      %s151 = sphi 0, %s135
      %s159 = sphi 0, %s161
      %s162 = sphi 0, %s159
      %s163 = sphi 0, %s162
      %s179 = sphi 0, %s163
    $region4: #{tpu_custom_call.1} parent=1 // loop_header_branch
      %26 = sbr.rel (%p24) target = $region8
    $region5: #{tpu_custom_call.1} parent=1 // loop_body
      %s28 = ssub.s32 %s23, 1
      %s29 = ssub.s32 %s23, 2
      %s36 = sadd.s32 1, %s31
      %p37 = scmp.ge.s32.totalorder %s36, 1
      %s38 = scalar_select %p37, 0, %s36
      %s39 = sadd.s32 1, %s30
      %s40 = scalar_select %p37, %s39, %s30
      %p41 = scmp.ge.s32.totalorder %s40, 2
      %s42 = scalar_select %p41, 0, %s40
      %s43 = ssub.s32 %s30, %s42
      %s44 = ssub.s32 %s31, %s38
      %s45 = sor.u32 %s43, %s44
      %p46 = scmp.eq.s32.totalorder %s45, 0
      %s48 = sadd.s32 %s47, 1
      %s49 = scalar_select %p46, %s47, %s48
      %p52 = pneg %p46
      %p53 = scmp.eq.s32.totalorder %s23, 1
      %p54 = por %p52, %p53
      %p55 = scmp.ne.s32.totalorder %s47, %s50
      %p56 = scmp.eq.s32.totalorder %s23, 0
      %p57 = por %p55, %p56
      %p58 = scmp.ne.s32.totalorder %s47, %s50
      %p59 = scmp.eq.s32.totalorder %s28, 1
      %p60 = por %p58, %p59
      %p61 = scmp.ne.s32.totalorder %s50, %s51
      %p62 = scmp.eq.s32.totalorder %s28, 0
      %p63 = por %p61, %p62
      %p64 = scmp.ne.s32.totalorder %s50, %s51
      %p65 = scmp.eq.s32.totalorder %s29, 1
      %p66 = por %p64, %p65
      %p68 = scmp.ne.s32.totalorder %s51, %s67
      %p69 = scmp.eq.s32.totalorder %s29, 0
      %p70 = por %p68, %p69
      %s71 = ssub.s32 %s30, %s42
      %s72 = ssub.s32 %s31, %s38
      %s73 = sor.u32 %s71, %s72
      %p74 = scmp.eq.s32.totalorder %s73, 0
      %s76 = sadd.s32 %s75, 1
      %s77 = scalar_select %p74, %s75, %s76
      %p80 = pneg %p74
      %p81 = scmp.eq.s32.totalorder %s23, 1
      %p82 = por %p80, %p81
      %p83 = scmp.ne.s32.totalorder %s75, %s78
      %p84 = scmp.eq.s32.totalorder %s23, 0
      %p85 = por %p83, %p84
      %p86 = scmp.ne.s32.totalorder %s75, %s78
      %p87 = scmp.eq.s32.totalorder %s28, 1
      %p88 = por %p86, %p87
      %p89 = scmp.ne.s32.totalorder %s78, %s79
      %p90 = scmp.eq.s32.totalorder %s28, 0
      %p91 = por %p89, %p90
      %p92 = scmp.ne.s32.totalorder %s78, %s79
      %p93 = scmp.eq.s32.totalorder %s29, 1
      %p94 = por %p92, %p93
      %p96 = scmp.ne.s32.totalorder %s79, %s95
      %p97 = scmp.eq.s32.totalorder %s29, 0
      %p98 = por %p96, %p97
      %s99 = ssub.s32 %s30, %s42
      %s100 = ssub.s32 %s31, %s38
      %s101 = sor.u32 %s99, %s100
      %p102 = scmp.eq.s32.totalorder %s101, 0
      %s104 = sadd.s32 %s103, 1
      %s105 = scalar_select %p102, %s103, %s104
      %p108 = pneg %p102
      %p109 = scmp.eq.s32.totalorder %s23, 1
      %p110 = por %p108, %p109
      %p111 = scmp.ne.s32.totalorder %s103, %s106
      %p112 = scmp.eq.s32.totalorder %s23, 0
      %p113 = por %p111, %p112
      %p114 = scmp.ne.s32.totalorder %s103, %s106
      %p115 = scmp.eq.s32.totalorder %s28, 1
      %p116 = por %p114, %p115
      %p117 = scmp.ne.s32.totalorder %s106, %s107
      %p118 = scmp.eq.s32.totalorder %s28, 0
      %p119 = por %p117, %p118
      %p120 = scmp.ne.s32.totalorder %s106, %s107
      %p121 = scmp.eq.s32.totalorder %s29, 1
      %p122 = por %p120, %p121
      %p124 = scmp.ne.s32.totalorder %s107, %s123
      %p125 = scmp.eq.s32.totalorder %s29, 0
      %p126 = por %p124, %p125
      %s127 = ssub.s32 %s30, %s42
      %s128 = ssub.s32 %s31, %s38
      %s129 = sor.u32 %s127, %s128
      %p130 = scmp.eq.s32.totalorder %s129, 0
      %s132 = sadd.s32 %s131, 1
      %s133 = scalar_select %p130, %s131, %s132
      %p136 = pneg %p130
      %p137 = scmp.eq.s32.totalorder %s23, 1
      %p138 = por %p136, %p137
      %p139 = scmp.ne.s32.totalorder %s131, %s134
      %p140 = scmp.eq.s32.totalorder %s23, 0
      %p141 = por %p139, %p140
      %p142 = scmp.ne.s32.totalorder %s131, %s134
      %p143 = scmp.eq.s32.totalorder %s28, 1
      %p144 = por %p142, %p143
      %p145 = scmp.ne.s32.totalorder %s134, %s135
      %p146 = scmp.eq.s32.totalorder %s28, 0
      %p147 = por %p145, %p146
      %p148 = scmp.ne.s32.totalorder %s134, %s135
      %p149 = scmp.eq.s32.totalorder %s29, 1
      %p150 = por %p148, %p149
      %p152 = scmp.ne.s32.totalorder %s135, %s151
      %p153 = scmp.eq.s32.totalorder %s29, 0
      %p154 = por %p152, %p153
      %s155 = ssub.s32 %s30, %s42
      %s156 = ssub.s32 %s31, %s38
      %s157 = sor.u32 %s155, %s156
      %p158 = scmp.eq.s32.totalorder %s157, 0
      %s160 = sadd.s32 %s159, 1
      %s161 = scalar_select %p158, %s159, %s160
      %p164 = pneg %p158
      %p165 = scmp.eq.s32.totalorder %s23, 1
      %p166 = por %p164, %p165
      %p167 = scmp.ne.s32.totalorder %s159, %s162
      %p168 = scmp.eq.s32.totalorder %s23, 0
      %p169 = por %p167, %p168
      %p170 = scmp.ne.s32.totalorder %s159, %s162
      %p171 = scmp.eq.s32.totalorder %s28, 1
      %p172 = por %p170, %p171
      %p173 = scmp.ne.s32.totalorder %s162, %s163
      %p174 = scmp.eq.s32.totalorder %s28, 0
      %p175 = por %p173, %p174
      %p176 = scmp.ne.s32.totalorder %s162, %s163
      %p177 = scmp.eq.s32.totalorder %s29, 1
      %p178 = por %p176, %p177
      %p180 = scmp.ne.s32.totalorder %s163, %s179
      %p181 = scmp.eq.s32.totalorder %s29, 0
      %p182 = por %p180, %p181
      %p183 = scmp.le.s32.totalorder 1, %s23
      %p184 = scmp.lt.s32.totalorder %s23, 3
      %p185 = pnand %p183, %p184
      %p186 = pneg %p185
      // Predicated region
      $region9: #{tpu_custom_call.1} parent=5 // pred_check
        _
      $region10: #{tpu_custom_call.1} parent=5 // pred_check_branch
        %188 = sbr.rel (%p185) target = $region12
      $region11: #{tpu_custom_call.1} parent=5 // pred_region
        %s189 = ssub.s32 %s23, 1
      $region12: #{tpu_custom_call.1} parent=5 // pred_fallthru
        _
      %p190 = scmp.lt.s32.totalorder %s23, 2
      // Predicated region
      $region13: #{tpu_custom_call.1} parent=5 // pred_check
        %p191 = pneg %p190
      $region14: #{tpu_custom_call.1} parent=5 // pred_check_branch
        %193 = sbr.rel (%p191) target = $region16
      $region15: #{tpu_custom_call.1} parent=5 // pred_region
        // Predicated region
        $region17: #{tpu_custom_call.1} parent=15 // pred_check
          %p194 = pneg %p57
        $region18: #{tpu_custom_call.1} parent=15 // pred_check_branch
          %196 = sbr.rel (%p194) target = $region20
        $region19: #{tpu_custom_call.1} parent=15 // pred_region
          %s197 = sand.u32 %s47, 1
          %s198 = scalar_lea.sflag [#allocation3], %s197
          %s199 = sand.u32 %s47, 1
          %s200 = smul.addr %s199, 32
          %s201 = scalar_lea.vmem [#allocation2], %s200
          %s203 = ssub.s32 512, 512
          %204 = vsyncadd %s198, %s203
          %s205 = smul.addr %s30, 4
          %s206 = sadd.s32 %s31, %s205
          %s207 = smul.addr %s206, 128
          %s208 = scalar_lea.hbm %s0, %s207
          %s209 = sshll.u32 %s201, 4
          %s210 = int_to_ptr.vmem [resolvable:$true] %s209
          %215 = dma.hbm_to_vmem [thread:$0]  %s208, 512, %s210, %s198, 128, 128, 8
        $region20: #{tpu_custom_call.1} parent=15 // pred_fallthru
          _
        // Predicated region
        $region21: #{tpu_custom_call.1} parent=15 // pred_check
          %p216 = pneg %p85
        $region22: #{tpu_custom_call.1} parent=15 // pred_check_branch
          %218 = sbr.rel (%p216) target = $region24
        $region23: #{tpu_custom_call.1} parent=15 // pred_region
          %s219 = sand.u32 %s75, 1
          %s220 = scalar_lea.sflag [#allocation6], %s219
          %s221 = sand.u32 %s75, 1
          %s222 = smul.addr %s221, 8
          %s223 = scalar_lea.vmem [#allocation5], %s222
          %s225 = ssub.s32 128, 128
          %226 = vsyncadd %s220, %s225
          %s227 = sadd.s32 %s31, %s30
          %s228 = smul.addr %s227, 128
          %s229 = scalar_lea.hbm %s1, %s228
          %s231 = sshll.u32 %s223, 4
          %s232 = int_to_ptr.vmem [resolvable:$true] %s231
          %234 = dma.hbm_to_vmem [thread:$0]  %s229, 128, %s232, %s220
        $region24: #{tpu_custom_call.1} parent=15 // pred_fallthru
          _
      $region16: #{tpu_custom_call.1} parent=5 // pred_fallthru
        _
      %p235 = scmp.le.s32.totalorder 1, %s23
      %p236 = scmp.lt.s32.totalorder %s23, 3
      %p237 = pnand %p235, %p236
      %p238 = pneg %p237
      // Predicated region
      $region25: #{tpu_custom_call.1} parent=5 // pred_check
        _
      $region26: #{tpu_custom_call.1} parent=5 // pred_check_branch
        %240 = sbr.rel (%p237) target = $region28
      $region27: #{tpu_custom_call.1} parent=5 // pred_region
        %s241 = ssub.s32 %s23, 1
        %s242 = sand.u32 %s50, 1
        %s243 = scalar_lea.sflag [#allocation3], %s242
        %s244 = sand.u32 %s50, 1
        %s245 = smul.addr %s244, 32
        %s246 = scalar_lea.vmem [#allocation2], %s245
        // Predicated region
        $region29: #{tpu_custom_call.1} parent=27 // pred_check
          %p247 = pneg %p63
        $region30: #{tpu_custom_call.1} parent=27 // pred_check_branch
          %249 = sbr.rel (%p247) target = $region32
        $region31: #{tpu_custom_call.1} parent=27 // pred_region
          %250 = dma.done %s243, 512
        $region32: #{tpu_custom_call.1} parent=27 // pred_fallthru
          _
        %s251 = sand.u32 %s78, 1
        %s252 = scalar_lea.sflag [#allocation6], %s251
        %s253 = sand.u32 %s78, 1
        %s254 = smul.addr %s253, 8
        %s255 = scalar_lea.vmem [#allocation5], %s254
        // Predicated region
        $region33: #{tpu_custom_call.1} parent=27 // pred_check
          %p256 = pneg %p91
        $region34: #{tpu_custom_call.1} parent=27 // pred_check_branch
          %258 = sbr.rel (%p256) target = $region36
        $region35: #{tpu_custom_call.1} parent=27 // pred_region
          %259 = dma.done %s252, 128
        $region36: #{tpu_custom_call.1} parent=27 // pred_fallthru
          _
        %s260 = sand.u32 %s50, 1
        %s261 = scalar_lea.sflag [#allocation3], %s260
        %s262 = sand.u32 %s50, 1
        %s263 = smul.addr %s262, 32
        %s264 = scalar_lea.vmem [#allocation2], %s263
        %p265 = pneg %p63
        %p266 = pneg %p60
        %s267 = sand.u32 %s78, 1
        %s268 = scalar_lea.sflag [#allocation6], %s267
        %s269 = sand.u32 %s78, 1
        %s270 = smul.addr %s269, 8
        %s271 = scalar_lea.vmem [#allocation5], %s270
        %p272 = pneg %p91
        %p273 = pneg %p88
        %p274 = pneg %p119
        %p275 = pneg %p116
        %s276 = sand.u32 %s106, 1
        %s277 = scalar_lea.sflag [#allocation4], %s276
        %s278 = sand.u32 %s106, 1
        %s279 = smul.addr %s278, 8
        %s280 = scalar_lea.vmem [#allocation7], %s279
        %p281 = pneg %p147
        %p282 = pneg %p144
        %s283 = sand.u32 %s28, 1
        %s284 = scalar_lea.sflag [#allocation9], %s283
        %s285 = sand.u32 %s134, 1
        %s286 = smul.addr %s285, 8
        %s287 = scalar_lea.vmem [#allocation8], %s286
        %p288 = pneg %p175
        %p289 = pneg %p172
        %s290 = sand.u32 %s28, 1
        %s291 = scalar_lea.sflag [#allocation9], %s290
        %s292 = sand.u32 %s162, 1
        %s293 = smul.addr %s292, 8
        %s294 = scalar_lea.vmem [#allocation10], %s293
        %v295 = vld [vmem:[%s246] sm:$0xff]
        %v296 = vld [vmem:[%s246 + $0x8] sm:$0xff]
        %v297 = vld [vmem:[%s246 + $0x10] sm:$0xff]
        %v298 = vld [vmem:[%s246 + $0x18] sm:$0xff]
        %v299 = vld [vmem:[%s255] sm:$0xff]
        %vm300 = vcmp.eq.s32.totalorder %v299, 255
        %v301 = vsel %vm300, 3, %v299
        %v302 = vmax.f32 %v295, %v296
        %v303 = vmax.f32 %v297, %v298
        %v304 = vmax.f32 %v302, %v303
        %v305 = vsub.f32 %v295, %v304
        %v306 = vsub.f32 %v296, %v304
        %v307 = vsub.f32 %v297, %v304
        %v308 = vsub.f32 %v298, %v304
        %v309 = vmul.f32 %v305, 1.442695
        %v310 = vpow.pop %v309
        %v311 = vmul.f32 %v306, 1.442695
        %v312 = vpow.pop %v311
        %v313 = vmul.f32 %v307, 1.442695
        %v314 = vpow.pop %v313
        %v315 = vmul.f32 %v308, 1.442695
        %v316 = vpow.pop %v315
        %v317 = vadd.f32 %v310, %v312
        %v318 = vadd.f32 %v317, %v314
        %v319 = vadd.f32 %v318, %v316
        %v320 = vlog2.pop %v319
        %v321 = vmul.f32 %v320, 0.6931472
        %vm322 = vcmp.eq.s32.totalorder %v301, 0
        %vm323 = vcmp.eq.s32.totalorder %v301, 1
        %vm324 = vcmp.eq.s32.totalorder %v301, 2
        %vm325 = vcmp.eq.s32.totalorder %v301, 3
        %v326 = vsel %vm322, %v295, 0.0
        %v327 = vsel %vm323, %v296, 0.0
        %v328 = vsel %vm324, %v297, 0.0
        %v329 = vsel %vm325, %v298, 0.0
        %v330 = vadd.f32 %v326, %v327
        %v331 = vadd.f32 %v330, %v328
        %v332 = vadd.f32 %v331, %v329
        %v333 = vsub.f32 %v332, %v304
        %v334 = vsub.f32 %v333, %v321
        %v335 = vlaneseq
        %v336 = vshrl.u32 %v335, 7
        %v337 = vlaneseq
        %v338 = vand.u32 %v337, 127
        %s339 = smul.u32 %s33, 8
        %v340 = vstv %s339
        %v341 = vadd.s32 %v340, %v336
        %v342 = vmul.u32 %v341, 128
        %v343 = vadd.s32 %v342, %v338
        %vm344 = vcmp.ge.s32.totalorder %v301, 0
        %vm345 = vcmp.lt.s32.totalorder %v301, 4
        %vm346 = vmand %vm344, %vm345
        %vm347 = vcmp.lt.s32.totalorder %v343, 256
        %vm348 = vmand %vm346, %vm347
        %vm349 = vcmp.ne.s32.totalorder %v301, 4294967196
        %v350 = vsel %vm348, 1.0, 0.0
        %vm351 = vmand %vm348, %vm349
        %v352 = vsub.f32 0.0, %v334
        %v353 = vsel %vm351, %v352, 0.0
        %v354 = vmul.f32 %v350, %v353
        %355 = vst [vmem:[%s280] sm:$0xff] %v354
        %356 = vst [vmem:[%s287] sm:$0xff] %v354
        %357 = vst [vmem:[%s294] sm:$0xff] %v350
        %s358 = sand.u32 %s106, 1
        %s359 = scalar_lea.sflag [#allocation4], %s358
        %s360 = sand.u32 %s106, 1
        %s361 = smul.addr %s360, 8
        %s362 = scalar_lea.vmem [#allocation7], %s361
        %s363 = sand.u32 %s28, 1
        %s364 = scalar_lea.sflag [#allocation9], %s363
        %s365 = sand.u32 %s134, 1
        %s366 = smul.addr %s365, 8
        %s367 = scalar_lea.vmem [#allocation8], %s366
        %s368 = sand.u32 %s28, 1
        %s369 = scalar_lea.sflag [#allocation9], %s368
        %s370 = sand.u32 %s162, 1
        %s371 = smul.addr %s370, 8
        %s372 = scalar_lea.vmem [#allocation10], %s371
        // Predicated region
        $region37: #{tpu_custom_call.1} parent=27 // pred_check
          %p373 = pneg %p116
        $region38: #{tpu_custom_call.1} parent=27 // pred_check_branch
          %375 = sbr.rel (%p373) target = $region40
        $region39: #{tpu_custom_call.1} parent=27 // pred_region
          %s377 = ssub.s32 128, 128
          %378 = vsyncadd %s359, %s377
          %s379 = sadd.s32 %s33, %s32
          %s380 = smul.addr %s379, 128
          %s381 = scalar_lea.hbm %s2, %s380
          %s383 = sshll.u32 %s362, 4
          %s384 = int_to_ptr.vmem [resolvable:$true] %s383
          %386 = dma.vmem_to_hbm [thread:$0]  %s384, 128, %s381, %s359
        $region40: #{tpu_custom_call.1} parent=27 // pred_fallthru
          _
        // Predicated region
        $region41: #{tpu_custom_call.1} parent=27 // pred_check
          %p387 = pneg %p144
        $region42: #{tpu_custom_call.1} parent=27 // pred_check_branch
          %389 = sbr.rel (%p387) target = $region44
        $region43: #{tpu_custom_call.1} parent=27 // pred_region
          %s391 = ssub.s32 128, 128
          %392 = vsyncadd %s364, %s391
          %s393 = sadd.s32 %s33, %s32
          %s394 = smul.addr %s393, 128
          %s395 = scalar_lea.hbm %s3, %s394
          %s397 = sshll.u32 %s367, 4
          %s398 = int_to_ptr.vmem [resolvable:$true] %s397
          %400 = dma.vmem_to_hbm [thread:$0]  %s398, 128, %s395, %s364
        $region44: #{tpu_custom_call.1} parent=27 // pred_fallthru
          _
        // Predicated region
        $region45: #{tpu_custom_call.1} parent=27 // pred_check
          %p401 = pneg %p172
        $region46: #{tpu_custom_call.1} parent=27 // pred_check_branch
          %403 = sbr.rel (%p401) target = $region48
        $region47: #{tpu_custom_call.1} parent=27 // pred_region
          %s405 = ssub.s32 128, 128
          %406 = vsyncadd %s369, %s405
          %s407 = sadd.s32 %s33, %s32
          %s408 = smul.addr %s407, 128
          %s409 = scalar_lea.hbm %s4, %s408
          %s411 = sshll.u32 %s372, 4
          %s412 = int_to_ptr.vmem [resolvable:$true] %s411
          %414 = dma.vmem_to_hbm [thread:$0]  %s412, 128, %s409, %s369
        $region48: #{tpu_custom_call.1} parent=27 // pred_fallthru
          _
      $region28: #{tpu_custom_call.1} parent=5 // pred_fallthru
        _
      %p415 = scmp.le.s32.totalorder 2, %s23
      // Predicated region
      $region49: #{tpu_custom_call.1} parent=5 // pred_check
        %p416 = pneg %p415
      $region50: #{tpu_custom_call.1} parent=5 // pred_check_branch
        %418 = sbr.rel (%p416) target = $region52
      $region51: #{tpu_custom_call.1} parent=5 // pred_region
        %s419 = ssub.s32 %s23, 2
        // Predicated region
        $region53: #{tpu_custom_call.1} parent=51 // pred_check
          %p420 = pneg %p122
        $region54: #{tpu_custom_call.1} parent=51 // pred_check_branch
          %422 = sbr.rel (%p420) target = $region56
        $region55: #{tpu_custom_call.1} parent=51 // pred_region
          %s423 = sand.u32 %s107, 1
          %s424 = scalar_lea.sflag [#allocation4], %s423
          %s425 = sand.u32 %s107, 1
          %s426 = smul.addr %s425, 8
          %s427 = scalar_lea.vmem [#allocation7], %s426
          %428 = dma.done %s424, 128
        $region56: #{tpu_custom_call.1} parent=51 // pred_fallthru
          _
        // Predicated region
        $region57: #{tpu_custom_call.1} parent=51 // pred_check
          %p429 = pneg %p150
        $region58: #{tpu_custom_call.1} parent=51 // pred_check_branch
          %431 = sbr.rel (%p429) target = $region60
        $region59: #{tpu_custom_call.1} parent=51 // pred_region
          %s432 = sand.u32 %s29, 1
          %s433 = scalar_lea.sflag [#allocation9], %s432
          %s434 = sand.u32 %s135, 1
          %s435 = smul.addr %s434, 8
          %s436 = scalar_lea.vmem [#allocation8], %s435
          %437 = dma.done %s433, 128
        $region60: #{tpu_custom_call.1} parent=51 // pred_fallthru
          _
        // Predicated region
        $region61: #{tpu_custom_call.1} parent=51 // pred_check
          %p438 = pneg %p178
        $region62: #{tpu_custom_call.1} parent=51 // pred_check_branch
          %440 = sbr.rel (%p438) target = $region64
        $region63: #{tpu_custom_call.1} parent=51 // pred_region
          %s441 = sand.u32 %s29, 1
          %s442 = scalar_lea.sflag [#allocation9], %s441
          %s443 = sand.u32 %s163, 1
          %s444 = smul.addr %s443, 8
          %s445 = scalar_lea.vmem [#allocation10], %s444
          %446 = dma.done %s442, 128
        $region64: #{tpu_custom_call.1} parent=51 // pred_fallthru
          _
      $region52: #{tpu_custom_call.1} parent=5 // pred_fallthru
        _
    $region6: #{tpu_custom_call.1} parent=1 // loop_footer
      %s27 = sadd.s32 1, %s23
    $region7: #{tpu_custom_call.1} parent=1 // loop_footer_branch
      %22 = sbr.rel target = $region3
    $region8: #{tpu_custom_call.1} parent=1 // loop_exit
      _
    %447 = vsyncpa [#allocation3], 1
    %s448 = scalar_lea.sflag [#allocation3], 1
    %449 = vsyncpa %s448, 1
    %450 = vsyncpa [#allocation6], 1
    %s451 = scalar_lea.sflag [#allocation6], 1
    %452 = vsyncpa %s451, 1
    %453 = vsyncpa [#allocation4], 1
    %s454 = scalar_lea.sflag [#allocation4], 1
    %455 = vsyncpa %s454, 1
    %456 = vsyncpa [#allocation9], 1
    %s457 = scalar_lea.sflag [#allocation9], 1
    %458 = vsyncpa %s457, 1

</llo_original>
